<compile_context>
chip_gen: v7x
topology: tpu7x:2x2x1
jax: 0.10.0
libtpu: 0.0.40
codegen_flags: <defaults>
</compile_context>

<pallas_src>
import math
import jax
import jax.numpy as jnp
from jax import lax
from jax.experimental import pallas as pl
from jax.experimental.pallas import tpu as pltpu


# ----------------------------------------------------------------------------
# Tile pickers
# ----------------------------------------------------------------------------
def _pick_token_tile(n_tokens, target_rows=256):
    """Largest divisor of N that is <= target_rows, preferring multiples of 8
    (keeps the (tb, tn, Dp) -> (tb*tn, Dp) collapse layout-free and the MXU
    LHS tile sublane-aligned)."""
    if n_tokens <= target_rows:
        return n_tokens
    best = 0
    for d in range(8, target_rows + 1, 8):
        if n_tokens % d == 0:
            best = d
    if best == 0:
        for d in range(1, target_rows + 1):
            if n_tokens % d == 0:
                best = d
    return max(best, 1)


def _pick_batch_tile(batch, tn, target_rows=256):
    """Batch tile such that tb*tn stays near the target MXU row count AND
    batch // tb >= 2 whenever batch >= 2, so the grid has at least two steps
    (double-buffering + v7x megacore sharding of the batch axis)."""
    max_tb = max(1, target_rows // max(tn, 1))
    if batch >= 2:
        max_tb = min(max_tb, batch // 2)
    tb = max(1, min(batch, max_tb))
    while tb > 1 and batch % tb != 0:
        tb -= 1
    return tb


# ----------------------------------------------------------------------------
# Fused kernel: proj matmul + (pos+bias) add + cls row + LayerNorm
# ----------------------------------------------------------------------------
def _make_fused_kernel(with_cls, tb, tn, n_token_tiles):
    def kernel(*refs):
        if with_cls:
            p_ref, w_ref, add_ref, cls_ref, g_ref, b_ref, o_ref = refs
        else:
            p_ref, w_ref, add_ref, g_ref, b_ref, o_ref = refs

        e = g_ref.shape[-1]
        dp = p_ref.shape[-1]

        # MXU: bf16 operands, f32 accumulation, (tb*tn, Dp) LHS tile.
        lhs = p_ref[...].reshape(tb * tn, dp)
        acc = jnp.dot(lhs, w_ref[...], preferred_element_type=jnp.float32)

        # Fused PosEmbedding add: add_ref = pos_patch[token tile j] + proj_bias.
        x = acc.reshape(tb, tn, e) + add_ref[...]

        # Two-pass LayerNorm (centered variance — safer than E[x^2]-E[x]^2).
        mu = jnp.mean(x, axis=-1, keepdims=True)
        xc = x - mu
        var = jnp.mean(xc * xc, axis=-1, keepdims=True)
        y = (xc * lax.rsqrt(var + 1e-5) * g_ref[...] + b_ref[...]).astype(o_ref.dtype)

        if not with_cls:
            o_ref[...] = y
            return

        # cls row: LayerNorm(cls + pos_cls) precomputed at init -> just
        # broadcast across the tb batches and store.
        cls_row = jnp.broadcast_to(
            cls_ref[...].astype(o_ref.dtype)[None, :, :], (tb, 1, e))

        if n_token_tiles == 1:
            # One contiguous (tb, 1+tn, E) value, one full-tile store
            # (no sublane-offset-1 partial stores).
            o_ref[...] = jnp.concatenate([cls_row, y], axis=1)
        else:
            j = pl.program_id(1)

            @pl.when(j == 0)
            def _():
                o_ref[:, : 1 + tn, :] = jnp.concatenate([cls_row, y], axis=1)

            @pl.when(j > 0)
            def _():
                # TODO(synk): with a cls-first token layout and a tiled N axis
                # the later tiles land at offset 1 + j*tn (one-sublane shift);
                # a cls-last layout (review option (a)) would make this aligned.
                o_ref[:, pl.ds(1 + j * tn, tn), :] = y

    return kernel


def fused_token_embed(patches, w_bf16, add_patch, cls_norm, gamma, beta, *,
                      apply_cls_token, out_dtype=jnp.float32, target_rows=256):
    """patches: (B, N, Dp) bf16, w_bf16: (Dp, E) bf16,
    add_patch: (N, E) f32 (= pos_patch + proj_bias),
    cls_norm: (1, E) f32 (= LayerNorm(cls + pos_cls), precomputed) or None,
    gamma/beta: (1, E) f32.  Returns (B, N(+1), E) in out_dtype."""
    B, N, Dp = patches.shape
    n2, E = add_patch.shape
    assert n2 == N

    # target_rows ~256 fills the 256-wide MXU on v6e/v7x; 128 suffices on v5e;
    # v6e (128 MiB VMEM) can push 512.
    tn = _pick_token_tile(N, target_rows)
    tb = _pick_batch_tile(B, tn, target_rows)
    if tb > 1 and tn % 8 != 0:
        tb = 1  # keep the (tb, tn, Dp) -> (tb*tn, Dp) collapse layout-free
    n_token_tiles = N // tn
    grid = (B // tb, n_token_tiles)
    s = N + 1 if apply_cls_token else N

    in_specs = [
        pl.BlockSpec((tb, tn, Dp), lambda i, j: (i, j, 0)),  # patch rows (M tile)
        pl.BlockSpec((Dp, E), lambda i, j: (0, 0)),          # weight (resident)
        pl.BlockSpec((tn, E), lambda i, j: (j, 0)),          # pos+bias, follows token tile
    ]
    inputs = [patches, w_bf16, add_patch]
    if apply_cls_token:
        in_specs.append(pl.BlockSpec((1, E), lambda i, j: (0, 0)))
        inputs.append(cls_norm)
    in_specs += [pl.BlockSpec((1, E), lambda i, j: (0, 0)),
                 pl.BlockSpec((1, E), lambda i, j: (0, 0))]
    inputs += [gamma, beta]

    if apply_cls_token:
        # Token axis kept whole per batch tile (cls + patch tokens share one
        # output block); the token-tile axis revisits it -> "arbitrary".
        out_spec = pl.BlockSpec((tb, s, E), lambda i, j: (i, 0, 0))
        dims = ("parallel", "arbitrary")
    else:
        out_spec = pl.BlockSpec((tb, tn, E), lambda i, j: (i, j, 0))
        dims = ("parallel", "parallel")

    return pl.pallas_call(
        _make_fused_kernel(apply_cls_token, tb, tn, n_token_tiles),
        out_shape=jax.ShapeDtypeStruct((B, s, E), out_dtype),
        grid_spec=pltpu.PrefetchScalarGridSpec(
            num_scalar_prefetch=0,
            grid=grid,
            in_specs=in_specs,
            out_specs=out_spec,
        ),
        compiler_params=pltpu.CompilerParams(
            dimension_semantics=dims,
            # v5e's default scoped-VMEM limit is only 16 MiB (32 MiB on
            # v6e/v7x); raise it so 256-row tiles actually double-buffer.
            vmem_limit_bytes=64 * 1024 * 1024),
    )(*inputs)


# ----------------------------------------------------------------------------
# VideoViT forward (glue in plain JAX, everything hot inside one Pallas call)
# ----------------------------------------------------------------------------
def _layernorm_f32(v, gamma, beta, eps=1e-5):
    mu = v.mean(-1, keepdims=True)
    var = ((v - mu) ** 2).mean(-1, keepdims=True)
    return (v - mu) * lax.rsqrt(var + eps) * gamma + beta


class VideoViTPallas:
    def __init__(self, frame_size=(3, 16, 16), num_frames=4,
                 patch_spatial=(8, 8), patch_temporal=2,
                 encoder_dim=128, apply_cls_token=True, seed=0,
                 out_dtype=jnp.float32):
        C, H, W = frame_size
        ph, pw = patch_spatial[1], patch_spatial[0]
        pt = patch_temporal
        self.frame_size = frame_size
        self.num_frames = num_frames
        self.patch_spatial = patch_spatial
        self.patch_temporal = patch_temporal
        self.encoder_dim = encoder_dim
        self.apply_cls_token = apply_cls_token
        self.out_dtype = out_dtype
        self.patch_dim = ph * pw * pt * C
        self.num_cuboids = ((H // patch_spatial[0]) * (W // patch_spatial[1])
                            * (num_frames // pt))

        key = jax.random.PRNGKey(seed)
        k_w, k_cls, k_pos = jax.random.split(key, 3)

        # Linear(patch_dim, encoder_dim), xavier_uniform, zero bias.
        fan_in, fan_out = self.patch_dim, encoder_dim
        bound = math.sqrt(6.0 / (fan_in + fan_out))
        # PyTorch weight is (out, in); store transposed (in, out) for the kernel.
        self.proj_w_t = jax.random.uniform(
            k_w, (fan_in, fan_out), jnp.float32, minval=-bound, maxval=bound)
        self.proj_w_bf16 = self.proj_w_t.astype(jnp.bfloat16)  # MXU operand
        self.proj_b = jnp.zeros((1, fan_out), jnp.float32)

        # cls token ~ N(0, 0.02), pos embed ~ trunc_normal(std=0.02)
        # (PosEmbedding's sinusoidal=False branch: a learned (1, n_pos, E) table).
        self.cls_token = 0.02 * jax.random.normal(
            k_cls, (1, 1, encoder_dim), jnp.float32)
        n_pos = self.num_cuboids + (1 if apply_cls_token else 0)
        self.pos_embed = 0.02 * jax.random.truncated_normal(
            k_pos, -2.0, 2.0, (1, n_pos, encoder_dim), jnp.float32)

        # LayerNorm params (init: weight=1, bias=0).
        self.ln_gamma = jnp.ones((1, encoder_dim), jnp.float32)
        self.ln_beta = jnp.zeros((1, encoder_dim), jnp.float32)

        # Precomputed additive / normalized terms (perf feedback):
        #   add_patch = pos_patch + proj_bias          (patch rows)
        #   cls_norm  = LayerNorm(cls + pos_cls)       (batch/input invariant;
        #               recompute if gamma/beta or cls/pos params change)
        if apply_cls_token:
            self.add_patch = self.pos_embed[0, 1:, :] + self.proj_b       # (N, E)
            cls_in = self.cls_token[0] + self.pos_embed[0, :1, :]          # (1, E)
            self.cls_norm = _layernorm_f32(cls_in, self.ln_gamma, self.ln_beta)
        else:
            self.add_patch = self.pos_embed[0] + self.proj_b
            self.cls_norm = None

    def _rearrange_patches(self, x):
        # 'b c (t pt) (h ph) (w pw) -> b (t h w) (pt ph pw c)'
        B, C, T, H, W = x.shape
        pt = self.patch_temporal
        ph, pw = self.patch_spatial[1], self.patch_spatial[0]
        t, h, w = T // pt, H // ph, W // pw
        x = x.reshape(B, C, t, pt, h, ph, w, pw)
        x = jnp.transpose(x, (0, 2, 4, 6, 3, 5, 7, 1))  # b t h w pt ph pw c
        return x.reshape(B, t * h * w, pt * ph * pw * C)

    def forward(self, x):
        # x: (B, C, T, H, W)
        # TODO(synk): interpolate_pos_encoding (trilinear resize) path not
        # needed here (npatch == N and H == W at these shapes).
        # TODO(synk): self.encoder is a user-supplied module (None by default);
        # treated as identity, so LayerNorm fuses directly onto the projection.
        # TODO(synk): pos_drop is nn.Dropout(drop) with drop=None -> Identity
        # (no-op), so dropout is intentionally omitted.
        # Cast to bf16 BEFORE the rearrange so the wrapper-side HBM transpose
        # pass moves half the bytes (perf feedback).
        patches = self._rearrange_patches(x.astype(jnp.bfloat16))  # (B, N, Dp) bf16
        return fused_token_embed(
            patches, self.proj_w_bf16, self.add_patch, self.cls_norm,
            self.ln_gamma, self.ln_beta,
            apply_cls_token=self.apply_cls_token, out_dtype=self.out_dtype)

    # Pure-JAX reference (f32) for correctness checking.
    def reference(self, x):
        B = x.shape[0]
        patches = self._rearrange_patches(x)
        proj = jnp.einsum('bnd,de->bne', patches, self.proj_w_t) + self.proj_b
        if self.apply_cls_token:
            tokens = proj + self.pos_embed[:, 1:, :]
            cls = jnp.broadcast_to(self.cls_token + self.pos_embed[:, :1, :],
                                   (B, 1, self.encoder_dim))
            tokens = jnp.concatenate([cls, tokens], axis=1)
        else:
            tokens = proj + self.pos_embed
        return _layernorm_f32(tokens, self.ln_gamma, self.ln_beta)


if __name__ == "__main__":
    # Small, module-consistent shapes: B=2, C=3, T=4 frames, 16x16 spatial,
    # 8x8x2 cuboids, encoder_dim=128 -> 8 cuboids + 1 cls token.
    model = VideoViTPallas(frame_size=(3, 16, 16), num_frames=4,
                           patch_spatial=(8, 8), patch_temporal=2,
                           encoder_dim=128, apply_cls_token=True, seed=0)

    key = jax.random.PRNGKey(0)
    x = jax.random.normal(key, (2, 3, 4, 16, 16), jnp.float32)  # (B, C, T, H, W)

    out = model.forward(x)
    out = jax.block_until_ready(out)

    assert out.shape == (2, model.num_cuboids + 1, model.encoder_dim), out.shape
    assert jnp.all(jnp.isfinite(out))

    # Correctness vs. f32 reference (tolerance covers bf16 matmul operands).
    ref = jax.block_until_ready(model.reference(x))
    assert jnp.allclose(out, ref, atol=5e-2, rtol=5e-2), float(
        jnp.max(jnp.abs(out - ref)))

    print("KERNEL_OK")
</pallas_src>

<mosaic_0001>
module attributes {stable_mosaic.version = 11 : i64} {
  func.func @kernel(%arg0: i32, %arg1: i32, %arg2: memref<1x8x384xbf16, #tpu.memory_space<vmem>>, %arg3: memref<384x128xbf16, #tpu.memory_space<vmem>>, %arg4: memref<8x128xf32, #tpu.memory_space<vmem>>, %arg5: memref<1x128xf32, #tpu.memory_space<vmem>>, %arg6: memref<1x128xf32, #tpu.memory_space<vmem>>, %arg7: memref<1x128xf32, #tpu.memory_space<vmem>>, %arg8: memref<1x9x128xf32, #tpu.memory_space<vmem>>) attributes {dimension_semantics = [#tpu.dimension_semantics<parallel>, #tpu.dimension_semantics<arbitrary>], iteration_bounds = array<i64: 2, 1>, scalar_prefetch = 0 : i64, scratch_operands = 0 : i64, tpu.core_type = #tpu.core_type<tc>, window_params = [{transform_indices = @transform_0, window_bounds = array<i64: 1, 8, 384>}, {pipeline_mode = #tpu.pipeline_mode<synchronous>, transform_indices = @transform_1, window_bounds = array<i64: 384, 128>}, {transform_indices = @transform_2, window_bounds = array<i64: 8, 128>}, {pipeline_mode = #tpu.pipeline_mode<synchronous>, transform_indices = @transform_3, window_bounds = array<i64: 1, 128>}, {pipeline_mode = #tpu.pipeline_mode<synchronous>, transform_indices = @transform_4, window_bounds = array<i64: 1, 128>}, {pipeline_mode = #tpu.pipeline_mode<synchronous>, transform_indices = @transform_5, window_bounds = array<i64: 1, 128>}, {transform_indices = @transform_6, window_bounds = array<i64: 1, 9, 128>}]} {
    %c0 = arith.constant 0 : index
    %c0_0 = arith.constant 0 : index
    %c0_1 = arith.constant 0 : index
    %0 = vector.load %arg2[%c0, %c0_0, %c0_1] : memref<1x8x384xbf16, #tpu.memory_space<vmem>>, vector<1x8x384xbf16>
    %1 = vector.shape_cast %0 : vector<1x8x384xbf16> to vector<8x384xbf16>
    %c0_2 = arith.constant 0 : index
    %c0_3 = arith.constant 0 : index
    %2 = vector.load %arg3[%c0_2, %c0_3] : memref<384x128xbf16, #tpu.memory_space<vmem>>, vector<384x128xbf16>
    %cst = arith.constant dense<0.000000e+00> : vector<8x128xf32>
    %3 = tpu.matmul %1, %2, %cst {dimension_numbers = #tpu.dot_dimension_numbers<[1], [0], [0], [1], [0, 0, 1, 1], [], []>} : vector<8x384xbf16>, vector<384x128xbf16>, vector<8x128xf32> -> vector<8x128xf32>
    %4 = vector.shape_cast %3 : vector<8x128xf32> to vector<1x8x128xf32>
    %c0_4 = arith.constant 0 : index
    %c0_5 = arith.constant 0 : index
    %5 = vector.load %arg4[%c0_4, %c0_5] : memref<8x128xf32, #tpu.memory_space<vmem>>, vector<8x128xf32>
    %6 = vector.shape_cast %5 : vector<8x128xf32> to vector<1x8x128xf32>
    %7 = arith.addf %4, %6 : vector<1x8x128xf32>
    %cst_6 = arith.constant dense<0.000000e+00> : vector<1x8xf32>
    %8 = vector.multi_reduction <add>, %7, %cst_6 [2] : vector<1x8x128xf32> to vector<1x8xf32>
    %9 = vector.shape_cast %8 : vector<1x8xf32> to vector<1x8x1xf32>
    %cst_7 = arith.constant 1.280000e+02 : f32
    %10 = vector.broadcast %cst_7 : f32 to vector<1x8x1xf32>
    %11 = arith.divf %9, %10 : vector<1x8x1xf32>
    %12 = vector.broadcast %11 : vector<1x8x1xf32> to vector<1x8x128xf32>
    %13 = arith.subf %7, %12 : vector<1x8x128xf32>
    %14 = arith.mulf %13, %13 : vector<1x8x128xf32>
    %cst_8 = arith.constant dense<0.000000e+00> : vector<1x8xf32>
    %15 = vector.multi_reduction <add>, %14, %cst_8 [2] : vector<1x8x128xf32> to vector<1x8xf32>
    %16 = vector.shape_cast %15 : vector<1x8xf32> to vector<1x8x1xf32>
    %cst_9 = arith.constant 1.280000e+02 : f32
    %17 = vector.broadcast %cst_9 : f32 to vector<1x8x1xf32>
    %18 = arith.divf %16, %17 : vector<1x8x1xf32>
    %cst_10 = arith.constant 9.99999974E-6 : f32
    %19 = vector.broadcast %cst_10 : f32 to vector<1x8x1xf32>
    %20 = arith.addf %18, %19 : vector<1x8x1xf32>
    %21 = math.rsqrt %20 : vector<1x8x1xf32>
    %22 = vector.broadcast %21 : vector<1x8x1xf32> to vector<1x8x128xf32>
    %23 = arith.mulf %13, %22 : vector<1x8x128xf32>
    %c0_11 = arith.constant 0 : index
    %c0_12 = arith.constant 0 : index
    %24 = vector.load %arg6[%c0_11, %c0_12] : memref<1x128xf32, #tpu.memory_space<vmem>>, vector<1x128xf32>
    %25 = vector.shape_cast %24 : vector<1x128xf32> to vector<1x1x128xf32>
    %26 = vector.broadcast %25 : vector<1x1x128xf32> to vector<1x8x128xf32>
    %27 = arith.mulf %23, %26 : vector<1x8x128xf32>
    %c0_13 = arith.constant 0 : index
    %c0_14 = arith.constant 0 : index
    %28 = vector.load %arg7[%c0_13, %c0_14] : memref<1x128xf32, #tpu.memory_space<vmem>>, vector<1x128xf32>
    %29 = vector.shape_cast %28 : vector<1x128xf32> to vector<1x1x128xf32>
    %30 = vector.broadcast %29 : vector<1x1x128xf32> to vector<1x8x128xf32>
    %31 = arith.addf %27, %30 : vector<1x8x128xf32>
    %c0_15 = arith.constant 0 : index
    %c0_16 = arith.constant 0 : index
    %32 = vector.load %arg5[%c0_15, %c0_16] : memref<1x128xf32, #tpu.memory_space<vmem>>, vector<1x128xf32>
    %33 = vector.shape_cast %32 : vector<1x128xf32> to vector<1x1x128xf32>
    %34 = tpu.concatenate %33, %31 in 1 : vector<1x1x128xf32>, vector<1x8x128xf32> -> vector<1x9x128xf32>
    %c0_17 = arith.constant 0 : index
    %c0_18 = arith.constant 0 : index
    %c0_19 = arith.constant 0 : index
    %35 = vector.load %arg8[%c0_17, %c0_18, %c0_19] : memref<1x9x128xf32, #tpu.memory_space<vmem>>, vector<1x9x128xf32>
    tpu.vector_store %arg8[%c0_17, %c0_18, %c0_19], %34 {strides = array<i32>} : memref<1x9x128xf32, #tpu.memory_space<vmem>>, vector<1x9x128xf32>,
    return
  }
  func.func @transform_0(%arg0: i32, %arg1: i32) -> (i32, i32, i32) {
    %c0_i32 = arith.constant 0 : i32
    %c0_i32_0 = arith.constant 0 : i32
    return %arg0, %arg1, %c0_i32 : i32, i32, i32
  }
  func.func @transform_1(%arg0: i32, %arg1: i32) -> (i32, i32) {
    %c0_i32 = arith.constant 0 : i32
    %c0_i32_0 = arith.constant 0 : i32
    %c0_i32_1 = arith.constant 0 : i32
    return %c0_i32, %c0_i32_0 : i32, i32
  }
  func.func @transform_2(%arg0: i32, %arg1: i32) -> (i32, i32) {
    %c0_i32 = arith.constant 0 : i32
    %c0_i32_0 = arith.constant 0 : i32
    return %arg1, %c0_i32 : i32, i32
  }
  func.func @transform_3(%arg0: i32, %arg1: i32) -> (i32, i32) {
    %c0_i32 = arith.constant 0 : i32
    %c0_i32_0 = arith.constant 0 : i32
    %c0_i32_1 = arith.constant 0 : i32
    return %c0_i32, %c0_i32_0 : i32, i32
  }
  func.func @transform_4(%arg0: i32, %arg1: i32) -> (i32, i32) {
    %c0_i32 = arith.constant 0 : i32
    %c0_i32_0 = arith.constant 0 : i32
    %c0_i32_1 = arith.constant 0 : i32
    return %c0_i32, %c0_i32_0 : i32, i32
  }
  func.func @transform_5(%arg0: i32, %arg1: i32) -> (i32, i32) {
    %c0_i32 = arith.constant 0 : i32
    %c0_i32_0 = arith.constant 0 : i32
    %c0_i32_1 = arith.constant 0 : i32
    return %c0_i32, %c0_i32_0 : i32, i32
  }
  func.func @transform_6(%arg0: i32, %arg1: i32) -> (i32, i32, i32) {
    %c0_i32 = arith.constant 0 : i32
    %c0_i32_0 = arith.constant 0 : i32
    %c0_i32_1 = arith.constant 0 : i32
    return %arg0, %c0_i32, %c0_i32_0 : i32, i32, i32
  }
}

</mosaic_0001>

<llo_original>
// kernel: tpu_custom_call.1
$region0: #{tpu_custom_call.1}
  #allocation0 [shape = 'u32[]', space=smem, size = 0x4, offset = 0x4, fixed_abs, tag = 'smem constant byte address 0x4 - core index']
  #allocation1 [shape = 'u32[144,128]{1,0:T(1,128)}', space=vmem, size = 0x12000, scoped, tag = 'internal scratch']
  %s0 = inlined_call_operand.hbm [shape: bf16[2,8,384], index: 0, kind: input, shape index: {}]
  %s1 = inlined_call_operand.hbm [shape: bf16[384,128], index: 1, kind: input, shape index: {}]
  %s2 = inlined_call_operand.hbm [shape: f32[8,128], index: 2, kind: input, shape index: {}]
  %s3 = inlined_call_operand.hbm [shape: f32[1,128], index: 3, kind: input, shape index: {}]
  %s4 = inlined_call_operand.hbm [shape: f32[1,128], index: 4, kind: input, shape index: {}]
  %s5 = inlined_call_operand.hbm [shape: f32[1,128], index: 5, kind: input, shape index: {}]
  %s6 = inlined_call_operand.hbm [shape: f32[2,9,128], index: 6, kind: output, shape index: {}]
  %s7 = sld [smem:[#allocation0]]
  $region81: #{tpu_custom_call.1} parent=0
    _
  %s9 = ssub.s32 1, %s7
  %s10 = scalar_select 0, %s9, %s7
  $region1: #{tpu_custom_call.1} parent=0
    #allocation2 [shape = 'u8[12288]{0}', space=vmem, size = 0x3000, scoped, tag = 'input window, operand 0']
    #allocation3 [shape = 's32[2]{0}', space=sflag, size = 0x8, scoped, tag = 'scoped memory for tpu_custom_call.1']
    #allocation4 [shape = 's32[2]{0}', space=sflag, size = 0x8, scoped, tag = 'scoped memory for tpu_custom_call.1']
    #allocation5 [shape = 'u8[98304]{0}', space=vmem, size = 0x18000, scoped, tag = 'input window, operand 1, single buffered']
    #allocation6 [shape = 's32[1]{0}', space=sflag, size = 0x4, scoped, tag = 'scoped memory for tpu_custom_call.1']
    #allocation7 [shape = 'u8[4096]{0}', space=vmem, size = 0x1000, scoped, tag = 'input window, operand 2, single buffered']
    #allocation8 [shape = 'u8[512]{0}', space=vmem, size = 0x400, scoped, tag = 'input window, operand 3, single buffered']
    #allocation9 [shape = 's32[1]{0}', space=sflag, size = 0x4, scoped, tag = 'scoped memory for tpu_custom_call.1']
    #allocation10 [shape = 'u8[512]{0}', space=vmem, size = 0x400, scoped, tag = 'input window, operand 4, single buffered']
    #allocation11 [shape = 'u8[512]{0}', space=vmem, size = 0x400, scoped, tag = 'input window, operand 5, single buffered']
    #allocation12 [shape = 's32[1]{0}', space=sflag, size = 0x4, scoped, tag = 'scoped memory for tpu_custom_call.1']
    #allocation13 [shape = 'u8[16384]{0}', space=vmem, size = 0x4000, scoped, tag = 'output window, operand 0']
    %11 = vsyncpa [#allocation3], 0
    %s12 = scalar_lea.sflag [#allocation3], 1
    %13 = vsyncpa %s12, 0
    %14 = vsyncpa [#allocation6], 0
    %15 = vsyncpa [#allocation9], 0
    %16 = vsyncpa [#allocation12], 0
    %17 = vsyncpa [#allocation4], 0
    %s18 = scalar_lea.sflag [#allocation4], 1
    %19 = vsyncpa %s18, 0
    loop: start=0, step=1, limit=4
    $region2: #{tpu_custom_call.1} parent=1 // loop_pre_header
      _
    $region3: #{tpu_custom_call.1} parent=1 // loop_header
      %s21 = sphi 0, %s25
      %p22 = scmp.ge.s32.totalorder %s21, 4
      %s28 = sphi 0, %s40
      %s29 = sphi 0, %s36
      %s30 = sphi 0, %s28
      %s31 = sphi 0, %s29
      %s32 = sphi 0, %s30
      %s33 = sphi 0, %s31
      %s45 = sphi 0, %s47
      %s48 = sphi 0, %s45
      %s49 = sphi 0, %s48
      %s65 = sphi 0, %s49
      %s69 = sphi 0, %s69
      %s71 = sphi 0, %s69
      %s72 = sphi 0, %s71
      %s86 = sphi 0, %s72
      %s92 = sphi 0, %s94
      %s95 = sphi 0, %s92
      %s96 = sphi 0, %s95
      %s112 = sphi 0, %s96
      %s116 = sphi 0, %s116
      %s118 = sphi 0, %s116
      %s119 = sphi 0, %s118
      %s133 = sphi 0, %s119
      %s137 = sphi 0, %s137
      %s139 = sphi 0, %s137
      %s140 = sphi 0, %s139
      %s154 = sphi 0, %s140
      %s158 = sphi 0, %s158
      %s160 = sphi 0, %s158
      %s161 = sphi 0, %s160
      %s175 = sphi 0, %s161
      %s181 = sphi 0, %s183
      %s184 = sphi 0, %s181
      %s185 = sphi 0, %s184
      %s201 = sphi 0, %s185
    $region4: #{tpu_custom_call.1} parent=1 // loop_header_branch
      %24 = sbr.rel (%p22) target = $region8
    $region5: #{tpu_custom_call.1} parent=1 // loop_body
      %s26 = ssub.s32 %s21, 1
      %s27 = ssub.s32 %s21, 2
      %s34 = sadd.s32 1, %s29
      %p35 = scmp.ge.s32.totalorder %s34, 1
      %s36 = scalar_select %p35, 0, %s34
      %s37 = sadd.s32 1, %s28
      %s38 = scalar_select %p35, %s37, %s28
      %p39 = scmp.ge.s32.totalorder %s38, 2
      %s40 = scalar_select %p39, 0, %s38
      %s41 = ssub.s32 %s28, %s40
      %s42 = ssub.s32 %s29, %s36
      %s43 = sor.u32 %s41, %s42
      %p44 = scmp.eq.s32.totalorder %s43, 0
      %s46 = sadd.s32 %s45, 1
      %s47 = scalar_select %p44, %s45, %s46
      %p50 = pneg %p44
      %p51 = scmp.eq.s32.totalorder %s21, 1
      %p52 = por %p50, %p51
      %p53 = scmp.ne.s32.totalorder %s45, %s48
      %p54 = scmp.eq.s32.totalorder %s21, 0
      %p55 = por %p53, %p54
      %p56 = scmp.ne.s32.totalorder %s45, %s48
      %p57 = scmp.eq.s32.totalorder %s26, 1
      %p58 = por %p56, %p57
      %p59 = scmp.ne.s32.totalorder %s48, %s49
      %p60 = scmp.eq.s32.totalorder %s26, 0
      %p61 = por %p59, %p60
      %p62 = scmp.ne.s32.totalorder %s48, %s49
      %p63 = scmp.eq.s32.totalorder %s27, 1
      %p64 = por %p62, %p63
      %p66 = scmp.ne.s32.totalorder %s49, %s65
      %p67 = scmp.eq.s32.totalorder %s27, 0
      %p68 = por %p66, %p67
      %s70 = sadd.s32 %s69, 1
      %p73 = scmp.eq.s32.totalorder %s21, 1
      %p74 = scmp.ne.s32.totalorder %s69, %s71
      %p75 = scmp.eq.s32.totalorder %s21, 0
      %p76 = por %p74, %p75
      %p77 = scmp.ne.s32.totalorder %s69, %s71
      %p78 = scmp.eq.s32.totalorder %s26, 1
      %p79 = por %p77, %p78
      %p80 = scmp.ne.s32.totalorder %s71, %s72
      %p81 = scmp.eq.s32.totalorder %s26, 0
      %p82 = por %p80, %p81
      %p83 = scmp.ne.s32.totalorder %s71, %s72
      %p84 = scmp.eq.s32.totalorder %s27, 1
      %p85 = por %p83, %p84
      %p87 = scmp.ne.s32.totalorder %s72, %s86
      %p88 = scmp.eq.s32.totalorder %s27, 0
      %p89 = por %p87, %p88
      %s90 = ssub.s32 %s29, %s36
      %p91 = scmp.eq.s32.totalorder %s90, 0
      %s93 = sadd.s32 %s92, 1
      %s94 = scalar_select %p91, %s92, %s93
      %p97 = pneg %p91
      %p98 = scmp.eq.s32.totalorder %s21, 1
      %p99 = por %p97, %p98
      %p100 = scmp.ne.s32.totalorder %s92, %s95
      %p101 = scmp.eq.s32.totalorder %s21, 0
      %p102 = por %p100, %p101
      %p103 = scmp.ne.s32.totalorder %s92, %s95
      %p104 = scmp.eq.s32.totalorder %s26, 1
      %p105 = por %p103, %p104
      %p106 = scmp.ne.s32.totalorder %s95, %s96
      %p107 = scmp.eq.s32.totalorder %s26, 0
      %p108 = por %p106, %p107
      %p109 = scmp.ne.s32.totalorder %s95, %s96
      %p110 = scmp.eq.s32.totalorder %s27, 1
      %p111 = por %p109, %p110
      %p113 = scmp.ne.s32.totalorder %s96, %s112
      %p114 = scmp.eq.s32.totalorder %s27, 0
      %p115 = por %p113, %p114
      %s117 = sadd.s32 %s116, 1
      %p120 = scmp.eq.s32.totalorder %s21, 1
      %p121 = scmp.ne.s32.totalorder %s116, %s118
      %p122 = scmp.eq.s32.totalorder %s21, 0
      %p123 = por %p121, %p122
      %p124 = scmp.ne.s32.totalorder %s116, %s118
      %p125 = scmp.eq.s32.totalorder %s26, 1
      %p126 = por %p124, %p125
      %p127 = scmp.ne.s32.totalorder %s118, %s119
      %p128 = scmp.eq.s32.totalorder %s26, 0
      %p129 = por %p127, %p128
      %p130 = scmp.ne.s32.totalorder %s118, %s119
      %p131 = scmp.eq.s32.totalorder %s27, 1
      %p132 = por %p130, %p131
      %p134 = scmp.ne.s32.totalorder %s119, %s133
      %p135 = scmp.eq.s32.totalorder %s27, 0
      %p136 = por %p134, %p135
      %s138 = sadd.s32 %s137, 1
      %p141 = scmp.eq.s32.totalorder %s21, 1
      %p142 = scmp.ne.s32.totalorder %s137, %s139
      %p143 = scmp.eq.s32.totalorder %s21, 0
      %p144 = por %p142, %p143
      %p145 = scmp.ne.s32.totalorder %s137, %s139
      %p146 = scmp.eq.s32.totalorder %s26, 1
      %p147 = por %p145, %p146
      %p148 = scmp.ne.s32.totalorder %s139, %s140
      %p149 = scmp.eq.s32.totalorder %s26, 0
      %p150 = por %p148, %p149
      %p151 = scmp.ne.s32.totalorder %s139, %s140
      %p152 = scmp.eq.s32.totalorder %s27, 1
      %p153 = por %p151, %p152
      %p155 = scmp.ne.s32.totalorder %s140, %s154
      %p156 = scmp.eq.s32.totalorder %s27, 0
      %p157 = por %p155, %p156
      %s159 = sadd.s32 %s158, 1
      %p162 = scmp.eq.s32.totalorder %s21, 1
      %p163 = scmp.ne.s32.totalorder %s158, %s160
      %p164 = scmp.eq.s32.totalorder %s21, 0
      %p165 = por %p163, %p164
      %p166 = scmp.ne.s32.totalorder %s158, %s160
      %p167 = scmp.eq.s32.totalorder %s26, 1
      %p168 = por %p166, %p167
      %p169 = scmp.ne.s32.totalorder %s160, %s161
      %p170 = scmp.eq.s32.totalorder %s26, 0
      %p171 = por %p169, %p170
      %p172 = scmp.ne.s32.totalorder %s160, %s161
      %p173 = scmp.eq.s32.totalorder %s27, 1
      %p174 = por %p172, %p173
      %p176 = scmp.ne.s32.totalorder %s161, %s175
      %p177 = scmp.eq.s32.totalorder %s27, 0
      %p178 = por %p176, %p177
      %s179 = ssub.s32 %s28, %s40
      %p180 = scmp.eq.s32.totalorder %s179, 0
      %s182 = sadd.s32 %s181, 1
      %s183 = scalar_select %p180, %s181, %s182
      %p186 = pneg %p180
      %p187 = scmp.eq.s32.totalorder %s21, 1
      %p188 = por %p186, %p187
      %p189 = scmp.ne.s32.totalorder %s181, %s184
      %p190 = scmp.eq.s32.totalorder %s21, 0
      %p191 = por %p189, %p190
      %p192 = scmp.ne.s32.totalorder %s181, %s184
      %p193 = scmp.eq.s32.totalorder %s26, 1
      %p194 = por %p192, %p193
      %p195 = scmp.ne.s32.totalorder %s184, %s185
      %p196 = scmp.eq.s32.totalorder %s26, 0
      %p197 = por %p195, %p196
      %p198 = scmp.ne.s32.totalorder %s184, %s185
      %p199 = scmp.eq.s32.totalorder %s27, 1
      %p200 = por %p198, %p199
      %p202 = scmp.ne.s32.totalorder %s185, %s201
      %p203 = scmp.eq.s32.totalorder %s27, 0
      %p204 = por %p202, %p203
      %p205 = scmp.le.s32.totalorder 1, %s21
      %p206 = scmp.lt.s32.totalorder %s21, 3
      %p207 = pnand %p205, %p206
      %p208 = pneg %p207
      // Predicated region
      $region9: #{tpu_custom_call.1} parent=5 // pred_check
        _
      $region10: #{tpu_custom_call.1} parent=5 // pred_check_branch
        %210 = sbr.rel (%p207) target = $region12
      $region11: #{tpu_custom_call.1} parent=5 // pred_region
        %s211 = ssub.s32 %s21, 1
        // Predicated region
        $region13: #{tpu_custom_call.1} parent=11 // pred_check
          %p212 = pneg %p82
        $region14: #{tpu_custom_call.1} parent=11 // pred_check_branch
          %214 = sbr.rel (%p212) target = $region16
        $region15: #{tpu_custom_call.1} parent=11 // pred_region
          %s216 = ssub.s32 3072, 3072
          %217 = vsyncadd [#allocation6], %s216
          %s218 = sshll.u32 [#allocation5], 4
          %s219 = int_to_ptr.vmem [resolvable:$true] %s218
          %224 = dma.hbm_to_vmem [thread:$0]  %s1, 3072, %s219, [#allocation6], 64, 64, 4
        $region16: #{tpu_custom_call.1} parent=11 // pred_fallthru
          _
        // Predicated region
        $region17: #{tpu_custom_call.1} parent=11 // pred_check
          %p225 = pneg %p108
        $region18: #{tpu_custom_call.1} parent=11 // pred_check_branch
          %227 = sbr.rel (%p225) target = $region20
        $region19: #{tpu_custom_call.1} parent=11 // pred_region
          %s229 = ssub.s32 128, 128
          %230 = vsyncadd [#allocation6], %s229
          %s231 = smul.addr %s31, 128
          %s232 = scalar_lea.hbm %s2, %s231
          %s234 = sshll.u32 [#allocation7], 4
          %s235 = int_to_ptr.vmem [resolvable:$true] %s234
          %237 = dma.hbm_to_vmem [thread:$0]  %s232, 128, %s235, [#allocation6]
        $region20: #{tpu_custom_call.1} parent=11 // pred_fallthru
          _
        // Predicated region
        $region21: #{tpu_custom_call.1} parent=11 // pred_check
          %p238 = pneg %p129
        $region22: #{tpu_custom_call.1} parent=11 // pred_check_branch
          %240 = sbr.rel (%p238) target = $region24
        $region23: #{tpu_custom_call.1} parent=11 // pred_region
          %s242 = ssub.s32 16, 16
          %243 = vsyncadd [#allocation9], %s242
          %s245 = sshll.u32 [#allocation8], 4
          %s246 = int_to_ptr.vmem [resolvable:$true] %s245
          %248 = dma.hbm_to_vmem [thread:$0]  %s3, 16, %s246, [#allocation9]
        $region24: #{tpu_custom_call.1} parent=11 // pred_fallthru
          _
        // Predicated region
        $region25: #{tpu_custom_call.1} parent=11 // pred_check
          %p249 = pneg %p150
        $region26: #{tpu_custom_call.1} parent=11 // pred_check_branch
          %251 = sbr.rel (%p249) target = $region28
        $region27: #{tpu_custom_call.1} parent=11 // pred_region
          %s253 = ssub.s32 16, 16
          %254 = vsyncadd [#allocation9], %s253
          %s256 = sshll.u32 [#allocation10], 4
          %s257 = int_to_ptr.vmem [resolvable:$true] %s256
          %259 = dma.hbm_to_vmem [thread:$0]  %s4, 16, %s257, [#allocation9]
        $region28: #{tpu_custom_call.1} parent=11 // pred_fallthru
          _
        // Predicated region
        $region29: #{tpu_custom_call.1} parent=11 // pred_check
          %p260 = pneg %p171
        $region30: #{tpu_custom_call.1} parent=11 // pred_check_branch
          %262 = sbr.rel (%p260) target = $region32
        $region31: #{tpu_custom_call.1} parent=11 // pred_region
          %s264 = ssub.s32 16, 16
          %265 = vsyncadd [#allocation12], %s264
          %s267 = sshll.u32 [#allocation11], 4
          %s268 = int_to_ptr.vmem [resolvable:$true] %s267
          %270 = dma.hbm_to_vmem [thread:$0]  %s5, 16, %s268, [#allocation12]
        $region32: #{tpu_custom_call.1} parent=11 // pred_fallthru
          _
      $region12: #{tpu_custom_call.1} parent=5 // pred_fallthru
        _
      %p271 = scmp.lt.s32.totalorder %s21, 2
      // Predicated region
      $region33: #{tpu_custom_call.1} parent=5 // pred_check
        %p272 = pneg %p271
      $region34: #{tpu_custom_call.1} parent=5 // pred_check_branch
        %274 = sbr.rel (%p272) target = $region36
      $region35: #{tpu_custom_call.1} parent=5 // pred_region
        // Predicated region
        $region37: #{tpu_custom_call.1} parent=35 // pred_check
          %p275 = pneg %p55
        $region38: #{tpu_custom_call.1} parent=35 // pred_check_branch
          %277 = sbr.rel (%p275) target = $region40
        $region39: #{tpu_custom_call.1} parent=35 // pred_region
          %s278 = sand.u32 %s45, 1
          %s279 = scalar_lea.sflag [#allocation3], %s278
          %s280 = sand.u32 %s45, 1
          %s281 = smul.addr %s280, 12
          %s282 = scalar_lea.vmem [#allocation2], %s281
          %s284 = ssub.s32 192, 192
          %285 = vsyncadd %s279, %s284
          %s286 = smul.addr %s29, 3
          %s287 = smul.addr %s28, 3
          %s288 = sadd.s32 %s286, %s287
          %s289 = smul.addr %s288, 64
          %s290 = scalar_lea.hbm %s0, %s289
          %s292 = sshll.u32 %s282, 4
          %s293 = int_to_ptr.vmem [resolvable:$true] %s292
          %295 = dma.hbm_to_vmem [thread:$0]  %s290, 192, %s293, %s279
        $region40: #{tpu_custom_call.1} parent=35 // pred_fallthru
          _
      $region36: #{tpu_custom_call.1} parent=5 // pred_fallthru
        _
      %p296 = scmp.le.s32.totalorder 1, %s21
      %p297 = scmp.lt.s32.totalorder %s21, 3
      %p298 = pnand %p296, %p297
      %p299 = pneg %p298
      // Predicated region
      $region41: #{tpu_custom_call.1} parent=5 // pred_check
        _
      $region42: #{tpu_custom_call.1} parent=5 // pred_check_branch
        %301 = sbr.rel (%p298) target = $region44
      $region43: #{tpu_custom_call.1} parent=5 // pred_region
        %s302 = ssub.s32 %s21, 1
        %s303 = sand.u32 %s48, 1
        %s304 = scalar_lea.sflag [#allocation3], %s303
        %s305 = sand.u32 %s48, 1
        %s306 = smul.addr %s305, 12
        %s307 = scalar_lea.vmem [#allocation2], %s306
        // Predicated region
        $region45: #{tpu_custom_call.1} parent=43 // pred_check
          %p308 = pneg %p61
        $region46: #{tpu_custom_call.1} parent=43 // pred_check_branch
          %310 = sbr.rel (%p308) target = $region48
        $region47: #{tpu_custom_call.1} parent=43 // pred_region
          %311 = dma.done %s304, 192
        $region48: #{tpu_custom_call.1} parent=43 // pred_fallthru
          _
        // Predicated region
        $region49: #{tpu_custom_call.1} parent=43 // pred_check
          %p312 = pneg %p82
        $region50: #{tpu_custom_call.1} parent=43 // pred_check_branch
          %314 = sbr.rel (%p312) target = $region52
        $region51: #{tpu_custom_call.1} parent=43 // pred_region
          %315 = dma.done [#allocation6], 3072
        $region52: #{tpu_custom_call.1} parent=43 // pred_fallthru
          _
        // Predicated region
        $region53: #{tpu_custom_call.1} parent=43 // pred_check
          %p316 = pneg %p108
        $region54: #{tpu_custom_call.1} parent=43 // pred_check_branch
          %318 = sbr.rel (%p316) target = $region56
        $region55: #{tpu_custom_call.1} parent=43 // pred_region
          %319 = dma.done [#allocation6], 128
        $region56: #{tpu_custom_call.1} parent=43 // pred_fallthru
          _
        // Predicated region
        $region57: #{tpu_custom_call.1} parent=43 // pred_check
          %p320 = pneg %p129
        $region58: #{tpu_custom_call.1} parent=43 // pred_check_branch
          %322 = sbr.rel (%p320) target = $region60
        $region59: #{tpu_custom_call.1} parent=43 // pred_region
          %323 = dma.done [#allocation9], 16
        $region60: #{tpu_custom_call.1} parent=43 // pred_fallthru
          _
        // Predicated region
        $region61: #{tpu_custom_call.1} parent=43 // pred_check
          %p324 = pneg %p150
        $region62: #{tpu_custom_call.1} parent=43 // pred_check_branch
          %326 = sbr.rel (%p324) target = $region64
        $region63: #{tpu_custom_call.1} parent=43 // pred_region
          %327 = dma.done [#allocation9], 16
        $region64: #{tpu_custom_call.1} parent=43 // pred_fallthru
          _
        // Predicated region
        $region65: #{tpu_custom_call.1} parent=43 // pred_check
          %p328 = pneg %p171
        $region66: #{tpu_custom_call.1} parent=43 // pred_check_branch
          %330 = sbr.rel (%p328) target = $region68
        $region67: #{tpu_custom_call.1} parent=43 // pred_region
          %331 = dma.done [#allocation12], 16
        $region68: #{tpu_custom_call.1} parent=43 // pred_fallthru
          _
        %s332 = sand.u32 %s48, 1
        %s333 = scalar_lea.sflag [#allocation3], %s332
        %s334 = sand.u32 %s48, 1
        %s335 = smul.addr %s334, 12
        %s336 = scalar_lea.vmem [#allocation2], %s335
        %p337 = pneg %p61
        %p338 = pneg %p58
        %p339 = pneg %p82
        %p340 = pneg %p79
        %p341 = pneg %p108
        %p342 = pneg %p105
        %p343 = pneg %p129
        %p344 = pneg %p126
        %p345 = pneg %p150
        %p346 = pneg %p147
        %p347 = pneg %p171
        %p348 = pneg %p168
        %p349 = pneg %p197
        %p350 = pneg %p194
        %s351 = sand.u32 %s184, 1
        %s352 = scalar_lea.sflag [#allocation4], %s351
        %s353 = sand.u32 %s184, 1
        %s354 = smul.addr %s353, 16
        %s355 = scalar_lea.vmem [#allocation13], %s354
        %v357 = vld [vmem:[%s307] sm:$0xff]
        %v358 = vld [vmem:[%s307 + $0x8] sm:$0xf]
        %v359 = vld [vmem:[#allocation5] sm:$0xf]
        %v360 = vld [vmem:[#allocation5 + $0x4] sm:$0xf]
        %v361 = vld [vmem:[#allocation5 + $0x8] sm:$0xf]
        %v362 = vld [vmem:[#allocation5 + $0xc] sm:$0xf]
        %v363 = vld [vmem:[#allocation5 + $0x10] sm:$0xf]
        %v364 = vld [vmem:[#allocation5 + $0x14] sm:$0xf]
        %v365 = vld [vmem:[#allocation5 + $0x18] sm:$0xf]
        %v366 = vld [vmem:[#allocation5 + $0x1c] sm:$0xf]
        %v367 = vld [vmem:[#allocation5 + $0x20] sm:$0xf]
        %v368 = vld [vmem:[#allocation5 + $0x24] sm:$0xf]
        %v369 = vld [vmem:[#allocation5 + $0x28] sm:$0xf]
        %v370 = vld [vmem:[#allocation5 + $0x2c] sm:$0xf]
        %v371 = vld [vmem:[#allocation5 + $0x30] sm:$0xf]
        %v372 = vld [vmem:[#allocation5 + $0x34] sm:$0xf]
        %v373 = vld [vmem:[#allocation5 + $0x38] sm:$0xf]
        %v374 = vld [vmem:[#allocation5 + $0x3c] sm:$0xf]
        %v375 = vld [vmem:[#allocation5 + $0x40] sm:$0xf]
        %v376 = vld [vmem:[#allocation5 + $0x44] sm:$0xf]
        %v377 = vld [vmem:[#allocation5 + $0x48] sm:$0xf]
        %v378 = vld [vmem:[#allocation5 + $0x4c] sm:$0xf]
        %v379 = vld [vmem:[#allocation5 + $0x50] sm:$0xf]
        %v380 = vld [vmem:[#allocation5 + $0x54] sm:$0xf]
        %v381 = vld [vmem:[#allocation5 + $0x58] sm:$0xf]
        %v382 = vld [vmem:[#allocation5 + $0x5c] sm:$0xf]
        %v383 = vld [vmem:[#allocation5 + $0x60] sm:$0xf]
        %v384 = vld [vmem:[#allocation5 + $0x64] sm:$0xf]
        %v385 = vld [vmem:[#allocation5 + $0x68] sm:$0xf]
        %v386 = vld [vmem:[#allocation5 + $0x6c] sm:$0xf]
        %v387 = vld [vmem:[#allocation5 + $0x70] sm:$0xf]
        %v388 = vld [vmem:[#allocation5 + $0x74] sm:$0xf]
        %v389 = vld [vmem:[#allocation5 + $0x78] sm:$0xf]
        %v390 = vld [vmem:[#allocation5 + $0x7c] sm:$0xf]
        %v391 = vld [vmem:[#allocation5 + $0x80] sm:$0xf]
        %v392 = vld [vmem:[#allocation5 + $0x84] sm:$0xf]
        %v393 = vld [vmem:[#allocation5 + $0x88] sm:$0xf]
        %v394 = vld [vmem:[#allocation5 + $0x8c] sm:$0xf]
        %v395 = vld [vmem:[#allocation5 + $0x90] sm:$0xf]
        %v396 = vld [vmem:[#allocation5 + $0x94] sm:$0xf]
        %v397 = vld [vmem:[#allocation5 + $0x98] sm:$0xf]
        %v398 = vld [vmem:[#allocation5 + $0x9c] sm:$0xf]
        %v399 = vld [vmem:[#allocation5 + $0xa0] sm:$0xf]
        %v400 = vld [vmem:[#allocation5 + $0xa4] sm:$0xf]
        %v401 = vld [vmem:[#allocation5 + $0xa8] sm:$0xf]
        %v402 = vld [vmem:[#allocation5 + $0xac] sm:$0xf]
        %v403 = vld [vmem:[#allocation5 + $0xb0] sm:$0xf]
        %v404 = vld [vmem:[#allocation5 + $0xb4] sm:$0xf]
        %v405 = vld [vmem:[#allocation5 + $0xb8] sm:$0xf]
        %v406 = vld [vmem:[#allocation5 + $0xbc] sm:$0xf]
        %v409 = vunpack.c.l.b16 %v357
        %v410 = vunpack.c.h.b16 %v357
        %v411 = vunpack.c.l.b16 %v358
        %v412 = vpack.c.b16 %v409, %v409
        %v413 = vpack.c.b16 %v410, %v410
        %v414 = vpack.c.b16 %v411, %v411
        %v466 = vunpack.c.l.b16 %v359
        %v467 = vunpack.c.l.b16 %v360
        %v468 = vunpack.c.l.b16 %v361
        %v469 = vunpack.c.l.b16 %v362
        %v470 = vunpack.c.l.b16 %v363
        %v471 = vunpack.c.l.b16 %v364
        %v472 = vunpack.c.l.b16 %v365
        %v473 = vunpack.c.l.b16 %v366
        %v474 = vunpack.c.l.b16 %v367
        %v475 = vunpack.c.l.b16 %v368
        %v476 = vunpack.c.l.b16 %v369
        %v477 = vunpack.c.l.b16 %v370
        %v478 = vunpack.c.l.b16 %v371
        %v479 = vunpack.c.l.b16 %v372
        %v480 = vunpack.c.l.b16 %v373
        %v481 = vunpack.c.l.b16 %v374
        %v482 = vunpack.c.l.b16 %v375
        %v483 = vunpack.c.l.b16 %v376
        %v484 = vunpack.c.l.b16 %v377
        %v485 = vunpack.c.l.b16 %v378
        %v486 = vunpack.c.l.b16 %v379
        %v487 = vunpack.c.l.b16 %v380
        %v488 = vunpack.c.l.b16 %v381
        %v489 = vunpack.c.l.b16 %v382
        %v490 = vunpack.c.l.b16 %v383
        %v491 = vunpack.c.l.b16 %v384
        %v492 = vunpack.c.l.b16 %v385
        %v493 = vunpack.c.l.b16 %v386
        %v494 = vunpack.c.l.b16 %v387
        %v495 = vunpack.c.l.b16 %v388
        %v496 = vunpack.c.l.b16 %v389
        %v497 = vunpack.c.l.b16 %v390
        %v498 = vunpack.c.l.b16 %v391
        %v499 = vunpack.c.l.b16 %v392
        %v500 = vunpack.c.l.b16 %v393
        %v501 = vunpack.c.l.b16 %v394
        %v502 = vunpack.c.l.b16 %v395
        %v503 = vunpack.c.l.b16 %v396
        %v504 = vunpack.c.l.b16 %v397
        %v505 = vunpack.c.l.b16 %v398
        %v506 = vunpack.c.l.b16 %v399
        %v507 = vunpack.c.l.b16 %v400
        %v508 = vunpack.c.l.b16 %v401
        %v509 = vunpack.c.l.b16 %v402
        %v510 = vunpack.c.l.b16 %v403
        %v511 = vunpack.c.l.b16 %v404
        %v512 = vunpack.c.l.b16 %v405
        %v513 = vunpack.c.l.b16 %v406
        %v514 = vpack.c.b16 %v467, %v466
        %v515 = vpack.c.b16 %v469, %v468
        %v516 = vpack.c.b16 %v471, %v470
        %v517 = vpack.c.b16 %v473, %v472
        %v518 = vpack.c.b16 %v475, %v474
        %v519 = vpack.c.b16 %v477, %v476
        %v520 = vpack.c.b16 %v479, %v478
        %v521 = vpack.c.b16 %v481, %v480
        %v522 = vpack.c.b16 %v483, %v482
        %v523 = vpack.c.b16 %v485, %v484
        %v524 = vpack.c.b16 %v487, %v486
        %v525 = vpack.c.b16 %v489, %v488
        %v526 = vpack.c.b16 %v491, %v490
        %v527 = vpack.c.b16 %v493, %v492
        %v528 = vpack.c.b16 %v495, %v494
        %v529 = vpack.c.b16 %v497, %v496
        %v530 = vpack.c.b16 %v499, %v498
        %v531 = vpack.c.b16 %v501, %v500
        %v532 = vpack.c.b16 %v503, %v502
        %v533 = vpack.c.b16 %v505, %v504
        %v534 = vpack.c.b16 %v507, %v506
        %v535 = vpack.c.b16 %v509, %v508
        %v536 = vpack.c.b16 %v511, %v510
        %v537 = vpack.c.b16 %v513, %v512
        %562 = vmatprep.subr.bf16.mxu0 0
        %563 = vmatpush1.bf16.msra.mxu0 %v514
        %564 = vmatprep.subr.bf16.mxu0 0
        %565 = vmatpush1.bf16.msra.mxu0 %v515
        %566 = vmatprep.subr.bf16.mxu0 0
        %567 = vmatpush1.bf16.msra.mxu0 %v516
        %568 = vmatprep.subr.bf16.mxu0 0
        %569 = vmatpush1.bf16.msra.mxu0 %v517
        %570 = vmatprep.subr.bf16.mxu0 0
        %571 = vmatpush1.bf16.msra.mxu0 %v518
        %572 = vmatprep.subr.bf16.mxu0 0
        %573 = vmatpush1.bf16.msra.mxu0 %v519
        %574 = vmatprep.subr.bf16.mxu0 0
        %575 = vmatpush1.bf16.msra.mxu0 %v520
        %576 = vmatprep.subr.bf16.mxu0 0
        %577 = vmatpush1.bf16.msra.mxu0 %v521
        %578 = vmatprep.subr.bf16.mxu0 0
        %579 = vmatpush1.bf16.msra.mxu0 %v522
        %580 = vmatprep.subr.bf16.mxu0 0
        %581 = vmatpush1.bf16.msra.mxu0 %v523
        %582 = vmatprep.subr.bf16.mxu0 0
        %583 = vmatpush1.bf16.msra.mxu0 %v524
        %584 = vmatprep.subr.bf16.mxu0 0
        %585 = vmatpush1.bf16.msra.mxu0 %v525
        %586 = vmatprep.subr.bf16.mxu0 0
        %587 = vmatpush1.bf16.msra.mxu0 %v526
        %588 = vmatprep.subr.bf16.mxu0 0
        %589 = vmatpush1.bf16.msra.mxu0 %v527
        %590 = vmatprep.subr.bf16.mxu0 0
        %591 = vmatpush1.bf16.msra.mxu0 %v528
        %592 = vmatprep.subr.bf16.mxu0 0
        %593 = vmatpush1.bf16.msra.mxu0 %v529
        %594 = vmatprep.mubr.bf16.mxu0 %v413
        %595 = vmatmul.mubr.bf16.gmra.mrb[0].mxu0 %v412
        %v596 = vpop.f32.mrb[0].mxu0
        %v597 = vadd.f32 0.0, %v596
        %v598 = vpop.f32.mrb[0].mxu0
        %v599 = vpop.f32.mrb[0].mxu0
        %v600 = vpop.f32.mrb[0].mxu0
        %601 = vdwg.mxu0
        %602 = vmatprep.subr.bf16.mxu0 0
        %603 = vmatpush1.bf16.msra.mxu0 %v530
        %604 = vmatprep.subr.bf16.mxu0 0
        %605 = vmatpush1.bf16.msra.mxu0 %v531
        %606 = vmatprep.subr.bf16.mxu0 0
        %607 = vmatpush1.bf16.msra.mxu0 %v532
        %608 = vmatprep.subr.bf16.mxu0 0
        %609 = vmatpush1.bf16.msra.mxu0 %v533
        %610 = vmatprep.subr.bf16.mxu0 0
        %611 = vmatpush1.bf16.msra.mxu0 %v534
        %612 = vmatprep.subr.bf16.mxu0 0
        %613 = vmatpush1.bf16.msra.mxu0 %v535
        %614 = vmatprep.subr.bf16.mxu0 0
        %615 = vmatpush1.bf16.msra.mxu0 %v536
        %616 = vmatprep.subr.bf16.mxu0 0
        %617 = vmatpush1.bf16.msra.mxu0 %v537
        %618 = vmatprep.subr.bf16.mxu0 0
        %619 = vmatpush1.bf16.msra.mxu0 0
        %620 = vmatprep.subr.bf16.mxu0 0
        %621 = vmatpush1.bf16.msra.mxu0 0
        %622 = vmatprep.subr.bf16.mxu0 0
        %623 = vmatpush1.bf16.msra.mxu0 0
        %624 = vmatprep.subr.bf16.mxu0 0
        %625 = vmatpush1.bf16.msra.mxu0 0
        %626 = vmatprep.subr.bf16.mxu0 0
        %627 = vmatpush1.bf16.msra.mxu0 0
        %628 = vmatprep.subr.bf16.mxu0 0
        %629 = vmatpush1.bf16.msra.mxu0 0
        %630 = vmatprep.subr.bf16.mxu0 0
        %631 = vmatpush1.bf16.msra.mxu0 0
        %632 = vmatprep.subr.bf16.mxu0 0
        %633 = vmatpush1.bf16.msra.mxu0 0
        %634 = vmatprep.mubr.bf16.mxu0 0
        %635 = vmatmul.mubr.bf16.gmra.mrb[0].mxu0 %v414
        %v636 = vpop.f32.mrb[0].mxu0
        %v637 = vadd.f32 %v597, %v636
        %v638 = vpop.f32.mrb[0].mxu0
        %v639 = vpop.f32.mrb[0].mxu0
        %v640 = vpop.f32.mrb[0].mxu0
        %641 = vdwg.mxu0
        %v642 = vld [vmem:[#allocation7] sm:$0xff]
        %v643 = vadd.f32 %v637, %v642
        %644 = vadd.xlane.f32.xlu0 %v643
        %v645 = vpop.xlane.xlu0 %644
        %v646 = vrcp.pop 128.0
        %v647 = vmul.f32 %v645, %v646
        %v648 = vsub.f32 %v643, %v647
        %v649 = vmul.f32 %v648, %v648
        %650 = vadd.xlane.f32.xlu0 %v649
        %v651 = vpop.xlane.xlu0 %650
        %v652 = vmul.f32 %v651, %v646
        %v653 = vadd.f32 %v652, 1e-05
        %v654 = vrsqrt.pop %v653
        %v655 = vmul.f32 %v648, %v654
        %v656 = vld [vmem:[#allocation10] sm:$0x1]
        %v658 = vlaneseq
        %v659 = vshrl.u32 %v658, 7
        %v660 = vsub.s32 0, %v659
        %v661 = vrot.slane %v656, %v660
        %v663 = vmul.f32 %v655, %v661
        %v664 = vld [vmem:[#allocation11] sm:$0x1]
        %v666 = vlaneseq
        %v667 = vshrl.u32 %v666, 7
        %v668 = vsub.s32 0, %v667
        %v669 = vrot.slane %v664, %v668
        %v671 = vadd.f32 %v663, %v669
        %v672 = vld [vmem:[#allocation8] sm:$0x1]
        %v674 = vrot.slane %v671, 7
        %vm676 = vcmask 1040384
        %v677 = vsel %vm676, %v672, %v674
        %678 = vst [vmem:[%s355] sm:$0xff] %v677
        %679 = vst [vmem:[%s355 + $0x8] sm:$0x1] %v674
        %s680 = sand.u32 %s184, 1
        %s681 = scalar_lea.sflag [#allocation4], %s680
        %s682 = sand.u32 %s184, 1
        %s683 = smul.addr %s682, 16
        %s684 = scalar_lea.vmem [#allocation13], %s683
        // Predicated region
        $region69: #{tpu_custom_call.1} parent=43 // pred_check
          %p685 = pneg %p194
        $region70: #{tpu_custom_call.1} parent=43 // pred_check_branch
          %687 = sbr.rel (%p685) target = $region72
        $region71: #{tpu_custom_call.1} parent=43 // pred_region
          %s689 = ssub.s32 256, 256
          %690 = vsyncadd %s681, %s689
          %s691 = smul.addr %s30, 2
          %s692 = smul.addr %s691, 128
          %s693 = scalar_lea.hbm %s6, %s692
          %s694 = sshll.u32 %s684, 4
          %s695 = int_to_ptr.vmem [resolvable:$true] %s694
          %700 = dma.vmem_to_hbm [thread:$0]  %s695, 256, %s693, %s681, 128, 128, 8
        $region72: #{tpu_custom_call.1} parent=43 // pred_fallthru
          _
      $region44: #{tpu_custom_call.1} parent=5 // pred_fallthru
        _
      %p701 = scmp.le.s32.totalorder 2, %s21
      // Predicated region
      $region73: #{tpu_custom_call.1} parent=5 // pred_check
        %p702 = pneg %p701
      $region74: #{tpu_custom_call.1} parent=5 // pred_check_branch
        %704 = sbr.rel (%p702) target = $region76
      $region75: #{tpu_custom_call.1} parent=5 // pred_region
        %s705 = ssub.s32 %s21, 2
        // Predicated region
        $region77: #{tpu_custom_call.1} parent=75 // pred_check
          %p706 = pneg %p200
        $region78: #{tpu_custom_call.1} parent=75 // pred_check_branch
          %708 = sbr.rel (%p706) target = $region80
        $region79: #{tpu_custom_call.1} parent=75 // pred_region
          %s709 = sand.u32 %s185, 1
          %s710 = scalar_lea.sflag [#allocation4], %s709
          %s711 = sand.u32 %s185, 1
          %s712 = smul.addr %s711, 16
          %s713 = scalar_lea.vmem [#allocation13], %s712
          %714 = dma.done %s710, 256
        $region80: #{tpu_custom_call.1} parent=75 // pred_fallthru
          _
      $region76: #{tpu_custom_call.1} parent=5 // pred_fallthru
        _
    $region6: #{tpu_custom_call.1} parent=1 // loop_footer
      %s25 = sadd.s32 1, %s21
    $region7: #{tpu_custom_call.1} parent=1 // loop_footer_branch
      %20 = sbr.rel target = $region3
    $region8: #{tpu_custom_call.1} parent=1 // loop_exit
      _
    %715 = vsyncpa [#allocation3], 1
    %s716 = scalar_lea.sflag [#allocation3], 1
    %717 = vsyncpa %s716, 1
    %718 = vsyncpa [#allocation6], 1
    %719 = vsyncpa [#allocation9], 1
    %720 = vsyncpa [#allocation12], 1
    %721 = vsyncpa [#allocation4], 1
    %s722 = scalar_lea.sflag [#allocation4], 1
    %723 = vsyncpa %s722, 1

</llo_original>
